<compile_context>
chip_gen: v7x
topology: tpu7x:2x2x1
jax: 0.10.0
libtpu: 0.0.40
codegen_flags: <defaults>
</compile_context>

<pallas_src>
import jax
import jax.numpy as jnp
from jax import lax
from jax.experimental import pallas as pl
from jax.experimental.pallas import tpu as pltpu

_EPS = 1e-8

# 2 inputs x 2 pipeline buffers of (tb, D) must fit this budget.
# 16 MiB keeps us under the default scoped-VMEM cap even on v5e and well under
# v7x's 64 MiB physical VMEM.
_VMEM_INPUT_BUDGET = 16 * 1024 * 1024


def _pick_batch_tile(B: int, D: int, itemsize: int) -> int:
    """Largest batch tile whose double-buffered inputs fit the VMEM budget."""
    rows = _VMEM_INPUT_BUDGET // (4 * D * itemsize)   # 2 inputs x 2 buffers
    rows = max(8, min(rows, 2048))
    if rows >= B:
        return B                                      # whole batch, single grid step
    # Multi-tile: multiple of 128 rows -> aligned sublane windows and amortized
    # masked stores on the (tb, 1) output column.
    return max(128, (rows // 128) * 128)


def _cosine_kernel(q_ref, d_ref, o_ref):
    # q_ref, d_ref: (tb, D) VMEM tiles (any input dtype); o_ref: (tb, 1) f32.
    q = q_ref[...].astype(jnp.float32)
    d = d_ref[...].astype(jnp.float32)

    dot = jnp.sum(q * d, axis=-1, keepdims=True)   # (tb, 1)
    qq = jnp.sum(q * q, axis=-1, keepdims=True)
    dd = jnp.sum(d * d, axis=-1, keepdims=True)

    # dot / max(sqrt(qq)*sqrt(dd), eps) == dot * rsqrt(max(qq*dd, eps^2))
    nsq = jnp.maximum(qq * dd, _EPS * _EPS)
    o_ref[...] = (dot * lax.rsqrt(nsq)).astype(o_ref.dtype)


def cosine_score(q_emb: jax.Array, d_emb: jax.Array, *, tb: int | None = None) -> jax.Array:
    """Cosine similarity along dim=1 of two [B, D] arrays -> [B] (f32)."""
    assert q_emb.ndim == 2 and q_emb.shape == d_emb.shape, \
        "question/document embeddings must be [B, D] with matching shapes"
    B, D = q_emb.shape
    itemsize = max(q_emb.dtype.itemsize, d_emb.dtype.itemsize)

    if tb is None:
        tb = _pick_batch_tile(B, D, itemsize)
    tb = min(tb, B)
    if tb < B:                       # multi-tile: keep sublane-aligned windows
        tb = max(8, (tb // 8) * 8)

    num_tiles = pl.cdiv(B, tb)       # ragged tail handled by Pallas (masked writeback)

    # Double-buffered input working set + slack; safe on v5e/v6e/v7x.
    in_bytes = 4 * tb * D * itemsize
    vmem_limit = int(min(48 * 2**20, max(32 * 2**20, in_bytes + (4 << 20))))

    cost = pl.CostEstimate(
        flops=6 * B * D,                                  # 3 fused mul-add reductions
        transcendentals=B,                                # one rsqrt per row
        bytes_accessed=2 * B * D * itemsize + B * 4,
    )

    out2d = pl.pallas_call(
        _cosine_kernel,
        out_shape=jax.ShapeDtypeStruct((B, 1), jnp.float32),
        grid_spec=pltpu.PrefetchScalarGridSpec(
            num_scalar_prefetch=0,
            grid=(num_tiles,),
            in_specs=[
                pl.BlockSpec((tb, D), lambda i: (i, 0)),
                pl.BlockSpec((tb, D), lambda i: (i, 0)),
            ],
            out_specs=pl.BlockSpec((tb, 1), lambda i: (i, 0)),
        ),
        compiler_params=pltpu.CompilerParams(
            dimension_semantics=("parallel",),    # megacore-shard the batch axis
            vmem_limit_bytes=vmem_limit,
        ),
        cost_estimate=cost,
    )(q_emb, d_emb)

    return out2d.reshape(B)


def retriever_double_forward(x, *, model_quest=None, model_doc=None,
                             inference: bool = False, tb: int | None = None) -> jax.Array:
    """Mirrors RetrieverDouble.forward.

    x = (x_q, x_d). The question encoder always runs; the document encoder is
    skipped when inference=True (documents are pre-computed embeddings).
    """
    x_q, x_d = x
    # TODO(synk): model_quest / model_doc are user-injected nn.Modules with no
    # defined architecture in the spec; they default to identity here.
    q_emb = model_quest(x_q) if model_quest is not None else x_q
    d_emb = x_d if inference else (model_doc(x_d) if model_doc is not None else x_d)
    return cosine_score(q_emb, d_emb, tb=tb)


if __name__ == "__main__":
    key = jax.random.PRNGKey(0)
    k1, k2, k3, k4, k5, k6 = jax.random.split(key, 6)

    def ref_cosine(q, d):
        qf = q.astype(jnp.float32)
        df = d.astype(jnp.float32)
        num = jnp.sum(qf * df, axis=1)
        den = jnp.maximum(jnp.linalg.norm(qf, axis=1) * jnp.linalg.norm(df, axis=1), _EPS)
        return num / den

    # 1) Small demo shape (batch=8, emb=32) — single-tile fast path.
    B, D = 8, 32
    q = jax.random.normal(k1, (B, D), dtype=jnp.float32)
    d = jax.random.normal(k2, (B, D), dtype=jnp.float32)
    out = jax.block_until_ready(retriever_double_forward((q, d)))
    assert out.shape == (B,)
    assert jnp.allclose(out, ref_cosine(q, d), atol=1e-5, rtol=1e-5)

    # 2) inference=True path (pre-computed doc embeddings) + multi-tile ragged grid.
    B, D = 300, 32
    q = jax.random.normal(k3, (B, D), dtype=jnp.float32)
    d = jax.random.normal(k4, (B, D), dtype=jnp.float32)
    out = jax.block_until_ready(retriever_double_forward((q, d), inference=True, tb=128))
    assert out.shape == (B,)
    assert jnp.allclose(out, ref_cosine(q, d), atol=1e-5, rtol=1e-5)

    # 3) bf16 embeddings fed straight to the kernel (no wrapper pre-cast), f32 accumulate.
    B, D = 16, 256
    q = jax.random.normal(k5, (B, D), dtype=jnp.float32).astype(jnp.bfloat16)
    d = jax.random.normal(k6, (B, D), dtype=jnp.float32).astype(jnp.bfloat16)
    out = jax.block_until_ready(cosine_score(q, d))
    assert out.shape == (B,)
    assert jnp.allclose(out, ref_cosine(q, d), atol=1e-3, rtol=1e-3)

    print("KERNEL_OK")
</pallas_src>

<mosaic_0001>
module attributes {stable_mosaic.version = 11 : i64} {
  func.func @_cosine_kernel(%arg0: i32, %arg1: memref<8x32xf32, #tpu.memory_space<vmem>>, %arg2: memref<8x32xf32, #tpu.memory_space<vmem>>, %arg3: memref<8x1xf32, #tpu.memory_space<vmem>>) attributes {dimension_semantics = [#tpu.dimension_semantics<parallel>], iteration_bounds = array<i64: 1>, scalar_prefetch = 0 : i64, scratch_operands = 0 : i64, tpu.core_type = #tpu.core_type<tc>, window_params = [{transform_indices = @transform_0, window_bounds = array<i64: 8, 32>}, {transform_indices = @transform_1, window_bounds = array<i64: 8, 32>}, {transform_indices = @transform_2, window_bounds = array<i64: 8, 1>}]} {
    %c0 = arith.constant 0 : index
    %c0_0 = arith.constant 0 : index
    %0 = vector.load %arg1[%c0, %c0_0] : memref<8x32xf32, #tpu.memory_space<vmem>>, vector<8x32xf32>
    %c0_1 = arith.constant 0 : index
    %c0_2 = arith.constant 0 : index
    %1 = vector.load %arg2[%c0_1, %c0_2] : memref<8x32xf32, #tpu.memory_space<vmem>>, vector<8x32xf32>
    %2 = arith.mulf %0, %1 : vector<8x32xf32>
    %cst = arith.constant dense<0.000000e+00> : vector<8xf32>
    %3 = vector.multi_reduction <add>, %2, %cst [1] : vector<8x32xf32> to vector<8xf32>
    %4 = vector.shape_cast %3 : vector<8xf32> to vector<8x1xf32>
    %5 = arith.mulf %0, %0 : vector<8x32xf32>
    %cst_3 = arith.constant dense<0.000000e+00> : vector<8xf32>
    %6 = vector.multi_reduction <add>, %5, %cst_3 [1] : vector<8x32xf32> to vector<8xf32>
    %7 = vector.shape_cast %6 : vector<8xf32> to vector<8x1xf32>
    %8 = arith.mulf %1, %1 : vector<8x32xf32>
    %cst_4 = arith.constant dense<0.000000e+00> : vector<8xf32>
    %9 = vector.multi_reduction <add>, %8, %cst_4 [1] : vector<8x32xf32> to vector<8xf32>
    %10 = vector.shape_cast %9 : vector<8xf32> to vector<8x1xf32>
    %11 = arith.mulf %7, %10 : vector<8x1xf32>
    %cst_5 = arith.constant 1.000000e-16 : f32
    %12 = vector.broadcast %cst_5 : f32 to vector<8x1xf32>
    %13 = arith.maximumf %11, %12 : vector<8x1xf32>
    %14 = math.rsqrt %13 : vector<8x1xf32>
    %15 = arith.mulf %4, %14 : vector<8x1xf32>
    %c0_6 = arith.constant 0 : index
    %c0_7 = arith.constant 0 : index
    %16 = vector.load %arg3[%c0_6, %c0_7] : memref<8x1xf32, #tpu.memory_space<vmem>>, vector<8x1xf32>
    tpu.vector_store %arg3[%c0_6, %c0_7], %15 {strides = array<i32>} : memref<8x1xf32, #tpu.memory_space<vmem>>, vector<8x1xf32>,
    return
  }
  func.func @transform_0(%arg0: i32) -> (i32, i32) {
    %c0_i32 = arith.constant 0 : i32
    %c0_i32_0 = arith.constant 0 : i32
    return %arg0, %c0_i32 : i32, i32
  }
  func.func @transform_1(%arg0: i32) -> (i32, i32) {
    %c0_i32 = arith.constant 0 : i32
    %c0_i32_0 = arith.constant 0 : i32
    return %arg0, %c0_i32 : i32, i32
  }
  func.func @transform_2(%arg0: i32) -> (i32, i32) {
    %c0_i32 = arith.constant 0 : i32
    %c0_i32_0 = arith.constant 0 : i32
    return %arg0, %c0_i32 : i32, i32
  }
}

</mosaic_0001>

<llo_original>
// kernel: tpu_custom_call.1
$region0: #{tpu_custom_call.1}
  #allocation0 [shape = 'u32[]', space=smem, size = 0x4, offset = 0x4, fixed_abs, tag = 'smem constant byte address 0x4 - core index']
  #allocation1 [shape = 'u32[144,128]{1,0:T(1,128)}', space=vmem, size = 0x12000, scoped, tag = 'internal scratch']
  %s0 = inlined_call_operand.hbm [shape: f32[8,32], index: 0, kind: input, shape index: {}]
  %s1 = inlined_call_operand.hbm [shape: f32[8,32], index: 1, kind: input, shape index: {}]
  %s2 = inlined_call_operand.vmem [shape: f32[8,1], index: 2, kind: output, shape index: {}]
  %s3 = sld [smem:[#allocation0]]
  $region26: #{tpu_custom_call.1} parent=0
    _
  %s5 = ssub.s32 1, %s3
  %s6 = scalar_select 0, %s5, %s3
  $region1: #{tpu_custom_call.1} parent=0
    #allocation2 [shape = 'u8[4096]{0}', space=vmem, size = 0x1000, scoped, tag = 'input window, operand 0, single buffered']
    #allocation3 [shape = 's32[1]{0}', space=sflag, size = 0x4, scoped, tag = 'scoped memory for tpu_custom_call.1']
    #allocation4 [shape = 'u8[4096]{0}', space=vmem, size = 0x1000, scoped, tag = 'input window, operand 1, single buffered']
    #allocation5 [shape = 's32[1]{0}', space=sflag, size = 0x4, scoped, tag = 'scoped memory for tpu_custom_call.1']
    %7 = vsyncpa [#allocation3], 0
    %8 = vsyncpa [#allocation5], 0
    // Predicated region
    $region2: #{tpu_custom_call.1} parent=1 // pred_check
      _
    $region3: #{tpu_custom_call.1} parent=1 // pred_check_branch
      %10 = sbr.rel (0) target = $region5
    $region4: #{tpu_custom_call.1} parent=1 // pred_region
      %s12 = ssub.s32 128, 128
      %13 = vsyncadd [#allocation3], %s12
      %s15 = sshll.u32 [#allocation2], 4
      %s16 = int_to_ptr.vmem [resolvable:$true] %s15
      %18 = dma.hbm_to_vmem [thread:$0]  %s0, 128, %s16, [#allocation3]
    $region5: #{tpu_custom_call.1} parent=1 // pred_fallthru
      _
    // Predicated region
    $region6: #{tpu_custom_call.1} parent=1 // pred_check
      _
    $region7: #{tpu_custom_call.1} parent=1 // pred_check_branch
      %20 = sbr.rel (0) target = $region9
    $region8: #{tpu_custom_call.1} parent=1 // pred_region
      %s22 = ssub.s32 128, 128
      %23 = vsyncadd [#allocation5], %s22
      %s25 = sshll.u32 [#allocation4], 4
      %s26 = int_to_ptr.vmem [resolvable:$true] %s25
      %28 = dma.hbm_to_vmem [thread:$0]  %s1, 128, %s26, [#allocation5]
    $region9: #{tpu_custom_call.1} parent=1 // pred_fallthru
      _
    // Predicated region
    $region10: #{tpu_custom_call.1} parent=1 // pred_check
      _
    $region11: #{tpu_custom_call.1} parent=1 // pred_check_branch
      %30 = sbr.rel (0) target = $region13
    $region12: #{tpu_custom_call.1} parent=1 // pred_region
      %31 = dma.done [#allocation3], 128
    $region13: #{tpu_custom_call.1} parent=1 // pred_fallthru
      _
    // Predicated region
    $region14: #{tpu_custom_call.1} parent=1 // pred_check
      _
    $region15: #{tpu_custom_call.1} parent=1 // pred_check_branch
      %33 = sbr.rel (0) target = $region17
    $region16: #{tpu_custom_call.1} parent=1 // pred_region
      %34 = dma.done [#allocation5], 128
    $region17: #{tpu_custom_call.1} parent=1 // pred_fallthru
      _
    %v35 = vld [vmem:[#allocation2] sm:$0xff]
    %v36 = vld [vmem:[#allocation4] sm:$0xff]
    %v37 = vmul.f32 %v35, %v36
    %vm38 = vcmask 261120
    %v39 = vsel %vm38, %v37, 0.0
    %40 = vadd.xlane.f32.xlu0 %v39
    %v41 = vpop.xlane.xlu0 %40
    %v42 = vmul.f32 %v35, %v35
    %v43 = vsel %vm38, %v42, 0.0
    %44 = vadd.xlane.f32.xlu0 %v43
    %v45 = vpop.xlane.xlu0 %44
    %v46 = vmul.f32 %v36, %v36
    %v47 = vsel %vm38, %v46, 0.0
    %48 = vadd.xlane.f32.xlu0 %v47
    %v49 = vpop.xlane.xlu0 %48
    %v50 = vmul.f32 %v45, %v49
    %v51 = vmax.f32 %v50, 1e-16
    %v52 = vrsqrt.pop %v51
    %v53 = vmul.f32 %v41, %v52
    %vm54 = vcmask 7168
    %55 = vst.msk [vmem:[%s2] sm:$0xff] %vm54, %v53
    // Predicated region
    $region18: #{tpu_custom_call.1} parent=1 // pred_check
      _
    $region19: #{tpu_custom_call.1} parent=1 // pred_check_branch
      %57 = sbr.rel (0) target = $region21
    $region20: #{tpu_custom_call.1} parent=1 // pred_region
      _
    $region21: #{tpu_custom_call.1} parent=1 // pred_fallthru
      _
    // Predicated region
    $region22: #{tpu_custom_call.1} parent=1 // pred_check
      _
    $region23: #{tpu_custom_call.1} parent=1 // pred_check_branch
      %59 = sbr.rel (0) target = $region25
    $region24: #{tpu_custom_call.1} parent=1 // pred_region
      _
    $region25: #{tpu_custom_call.1} parent=1 // pred_fallthru
      _
    %60 = vsyncpa [#allocation3], 1
    %61 = vsyncpa [#allocation5], 1

</llo_original>
